<compile_context>
chip_gen: v6e
topology: v6e:2x2x1
jax: 0.10.0
libtpu: 0.0.40
codegen_flags: <defaults>
</compile_context>

<pallas_src>
import jax
import jax.numpy as jnp
from jax.experimental import pallas as pl
from jax.experimental.pallas import tpu as pltpu

# Sizes implied by the module (string.printable vocab = 100 in the original script)
INPUT_SIZE = 100      # vocab
EMBEDDING_SIZE = 70
HIDDEN_SIZE = 100
OUTPUT_SIZE = 100
NUM_LAYERS = 1
BATCH_SIZE = 1

# Lane-padded sizes (128-aligned).
EP = 128              # padded embedding width
HP = 128              # padded hidden width
OP = 128              # padded output width
GP = 128              # per-gate lane width (gates at offsets 0/128/256)
KP = EP + HP          # fused matmul contraction dim (256)


def gru_seq_kernel(tok_ref,        # SMEM scalar-prefetch: (T,) int32 token ids
                   x_ref,          # (1, 1, EP)  gathered embedding row for step t
                   h0_ref,         # (1, HP)     initial hidden (padded)
                   w_fused_ref,    # (KP, 3*GP)  [W_ih^T ; W_hh^T], gate-padded
                   b_fused_ref,    # (1, 3*GP)   b_ih + b_hh, gate-padded
                   w_hhn_ref,      # (HP, HP)    W_hn^T (padded)
                   b_hhn_ref,      # (1, HP)     b_hn (padded)
                   w_fc_ref,       # (HP, OP)    W_fc^T (padded)
                   b_fc_ref,       # (1, OP)     b_fc (padded)
                   y_ref,          # (1, 1, OP)  per-step logits block
                   h_out_ref,      # (1, HP)     final hidden state
                   h_scr):         # VMEM scratch (1, HP): recurrent hidden
    t = pl.program_id(0)

    @pl.when(t == 0)
    def _init():
        h_scr[...] = h0_ref[...]

    x = x_ref[0]                     # (1, EP)
    h = h_scr[...]                   # (1, HP)

    # Fused gate matmul: [x | h] @ [W_ih^T ; W_hh^T]  (single MXU pass, K=256).
    xh = jnp.concatenate([x, h], axis=1)                                  # (1, KP)
    gates = (jnp.dot(xh, w_fused_ref[...], preferred_element_type=jnp.float32)
             + b_fused_ref[...])                                          # (1, 3*GP)
    # Hidden-only n-gate projection (needed because n uses r * (W_hn h + b_hn)).
    gh_n = (jnp.dot(h, w_hhn_ref[...], preferred_element_type=jnp.float32)
            + b_hhn_ref[...])                                             # (1, HP)

    # PyTorch GRU gate equations (gate order r, z, n), 128-aligned lane slices.
    r = jax.nn.sigmoid(gates[:, 0:GP])
    z = jax.nn.sigmoid(gates[:, GP:2 * GP])
    # fused_n = gx_n + gh_n  =>  n = tanh(gx_n + r*gh_n) = tanh(fused_n + (r-1)*gh_n)
    n = jnp.tanh(gates[:, 2 * GP:3 * GP] + (r - 1.0) * gh_n)
    h_new = (1.0 - z) * n + z * h

    h_scr[...] = h_new

    y = (jnp.dot(h_new, w_fc_ref[...], preferred_element_type=jnp.float32)
         + b_fc_ref[...])                                                 # (1, OP)
    y_ref[0] = y

    @pl.when(t == pl.num_programs(0) - 1)
    def _finalize():
        h_out_ref[...] = h_new


def init_params(key):
    """Deterministic logical parameters (PyTorch-style layouts, f32)."""
    ks = jax.random.split(key, 8)
    E, H, V, O = EMBEDDING_SIZE, HIDDEN_SIZE, INPUT_SIZE, OUTPUT_SIZE

    def u(k, shape, bound):
        return jax.random.uniform(k, shape, jnp.float32, -bound, bound)

    bh = 1.0 / jnp.sqrt(H)
    return {
        "enc":    jax.random.normal(ks[0], (V, E), jnp.float32),   # nn.Embedding ~ N(0,1)
        "w_ih_t": u(ks[1], (E, 3 * H), bh),                        # GRU weight_ih^T
        "b_ih":   u(ks[2], (1, 3 * H), bh),
        "w_hh_t": u(ks[3], (H, 3 * H), bh),                        # GRU weight_hh^T
        "b_hh":   u(ks[4], (1, 3 * H), bh),
        "w_fc_t": u(ks[5], (H, O), bh),                            # Linear weight^T
        "b_fc":   u(ks[6], (1, O), bh),
    }


def pack_params(p):
    """Pad/realign logical params into the lane-dense kernel layout."""
    E, H, V, O = EMBEDDING_SIZE, HIDDEN_SIZE, INPUT_SIZE, OUTPUT_SIZE

    enc_p = jnp.zeros((V, 1, EP), jnp.float32).at[:, 0, :E].set(p["enc"])

    w_fused = jnp.zeros((KP, 3 * GP), jnp.float32)
    b_fused = jnp.zeros((1, 3 * GP), jnp.float32)
    for g in range(3):                      # gate order r, z, n
        src = slice(g * H, (g + 1) * H)
        dst = slice(g * GP, g * GP + H)
        w_fused = w_fused.at[:E, dst].set(p["w_ih_t"][:, src])
        w_fused = w_fused.at[EP:EP + H, dst].set(p["w_hh_t"][:, src])
        b_fused = b_fused.at[:, dst].set(p["b_ih"][:, src] + p["b_hh"][:, src])

    w_hhn = jnp.zeros((HP, HP), jnp.float32).at[:H, :H].set(p["w_hh_t"][:, 2 * H:3 * H])
    b_hhn = jnp.zeros((1, HP), jnp.float32).at[:, :H].set(p["b_hh"][:, 2 * H:3 * H])
    w_fc = jnp.zeros((HP, OP), jnp.float32).at[:H, :O].set(p["w_fc_t"])
    b_fc = jnp.zeros((1, OP), jnp.float32).at[:, :O].set(p["b_fc"])

    return {"enc_p": enc_p, "w_fused": w_fused, "b_fused": b_fused,
            "w_hhn": w_hhn, "b_hhn": b_hhn, "w_fc": w_fc, "b_fc": b_fc}


def rnn_net_sequence(packed, tokens, hidden):
    """Run T GRU steps in one pallas_call.

    tokens: (T,) int32; hidden: (NUM_LAYERS, BATCH_SIZE, H) f32.
    Returns (y: (T, O), hidden: (NUM_LAYERS, BATCH_SIZE, H)).
    """
    T = tokens.shape[0]
    H, O = HIDDEN_SIZE, OUTPUT_SIZE
    h0_p = jnp.zeros((1, HP), jnp.float32).at[:, :H].set(
        hidden.reshape(1, H).astype(jnp.float32))

    def resident(shape):
        # Same block for every grid step -> stays VMEM-resident across the sequence.
        return pl.BlockSpec(shape, lambda t, tok: (0,) * len(shape))

    y_p, h_out_p = pl.pallas_call(
        gru_seq_kernel,
        out_shape=(jax.ShapeDtypeStruct((T, 1, OP), jnp.float32),
                   jax.ShapeDtypeStruct((1, HP), jnp.float32)),
        grid_spec=pltpu.PrefetchScalarGridSpec(
            num_scalar_prefetch=1,
            grid=(T,),
            in_specs=[
                # Embedding: gather exactly one row per step via the prefetched token ids.
                pl.BlockSpec((1, 1, EP), lambda t, tok: (tok[t], 0, 0)),
                resident((1, HP)),            # h0
                resident((KP, 3 * GP)),       # fused gate weights
                resident((1, 3 * GP)),        # fused gate bias
                resident((HP, HP)),           # W_hn^T
                resident((1, HP)),            # b_hn
                resident((HP, OP)),           # W_fc^T
                resident((1, OP)),            # b_fc
            ],
            out_specs=(pl.BlockSpec((1, 1, OP), lambda t, tok: (t, 0, 0)),
                       resident((1, HP))),
            scratch_shapes=[pltpu.VMEM((1, HP), jnp.float32)],
        ),
        compiler_params=pltpu.CompilerParams(dimension_semantics=("arbitrary",)),
    )(tokens.astype(jnp.int32), packed["enc_p"], h0_p,
      packed["w_fused"], packed["b_fused"], packed["w_hhn"], packed["b_hhn"],
      packed["w_fc"], packed["b_fc"])

    y = y_p[:, 0, :O]                                   # trim lane padding
    h_out = h_out_p[:, :H].reshape(NUM_LAYERS, BATCH_SIZE, H)
    return y, h_out


def rnn_net_forward(packed, token_idx, hidden):
    """Single-step forward matching the PyTorch module: (y (1,O), hidden)."""
    y, h = rnn_net_sequence(packed, token_idx.reshape(-1), hidden)
    return y[-1:], h


# ---------------------------------------------------------------------------
# Pure-JAX reference (mirrors torch semantics) for correctness checking.
# ---------------------------------------------------------------------------
def _ref_step(p, tok, h):
    H = HIDDEN_SIZE
    x = p["enc"][tok][None, :]                          # (1, E)
    gx = x @ p["w_ih_t"] + p["b_ih"]
    gh = h @ p["w_hh_t"] + p["b_hh"]
    r = jax.nn.sigmoid(gx[:, 0:H] + gh[:, 0:H])
    z = jax.nn.sigmoid(gx[:, H:2 * H] + gh[:, H:2 * H])
    n = jnp.tanh(gx[:, 2 * H:3 * H] + r * gh[:, 2 * H:3 * H])
    h_new = (1.0 - z) * n + z * h
    y = h_new @ p["w_fc_t"] + p["b_fc"]
    return y, h_new


def rnn_net_sequence_reference(p, tokens, hidden):
    h = hidden.reshape(1, HIDDEN_SIZE)
    ys = []
    for i in range(tokens.shape[0]):
        y, h = _ref_step(p, tokens[i], h)
        ys.append(y)
    return jnp.concatenate(ys, axis=0), h.reshape(NUM_LAYERS, BATCH_SIZE, HIDDEN_SIZE)


if __name__ == "__main__":
    key = jax.random.PRNGKey(0)
    params = init_params(jax.random.PRNGKey(42))
    packed = pack_params(params)

    SEQ_LEN = 8
    tokens = jax.random.randint(key, (SEQ_LEN,), 0, INPUT_SIZE, dtype=jnp.int32)
    hidden0 = jnp.zeros((NUM_LAYERS, BATCH_SIZE, HIDDEN_SIZE), jnp.float32)

    # Sequence-resident kernel (T steps inside one pallas_call).
    y_seq, h_seq = rnn_net_sequence(packed, tokens, hidden0)
    jax.block_until_ready((y_seq, h_seq))

    y_ref, h_ref = rnn_net_sequence_reference(params, tokens, hidden0)
    assert y_seq.shape == (SEQ_LEN, OUTPUT_SIZE)
    assert h_seq.shape == (NUM_LAYERS, BATCH_SIZE, HIDDEN_SIZE)
    assert jnp.allclose(y_seq, y_ref, atol=2e-4), "sequence logits mismatch vs reference"
    assert jnp.allclose(h_seq, h_ref, atol=2e-4), "sequence hidden mismatch vs reference"

    # Single-token forward (exact PyTorch module signature: one token, one step).
    y1, h1 = rnn_net_forward(packed, tokens[:1], hidden0)
    jax.block_until_ready((y1, h1))
    y1_ref, h1_ref = rnn_net_sequence_reference(params, tokens[:1], hidden0)
    assert y1.shape == (BATCH_SIZE, OUTPUT_SIZE)
    assert jnp.allclose(y1, y1_ref, atol=2e-4), "single-step logits mismatch vs reference"
    assert jnp.allclose(h1, h1_ref, atol=2e-4), "single-step hidden mismatch vs reference"

    print("KERNEL_OK")
</pallas_src>

<mosaic_0001>
module attributes {stable_mosaic.version = 11 : i64} {
  func.func @gru_seq_kernel(%arg0: i32, %arg1: memref<8xi32, #tpu.memory_space<smem>>, %arg2: memref<1x1x128xf32, #tpu.memory_space<vmem>>, %arg3: memref<1x128xf32, #tpu.memory_space<vmem>>, %arg4: memref<256x384xf32, #tpu.memory_space<vmem>>, %arg5: memref<1x384xf32, #tpu.memory_space<vmem>>, %arg6: memref<128x128xf32, #tpu.memory_space<vmem>>, %arg7: memref<1x128xf32, #tpu.memory_space<vmem>>, %arg8: memref<128x128xf32, #tpu.memory_space<vmem>>, %arg9: memref<1x128xf32, #tpu.memory_space<vmem>>, %arg10: memref<1x1x128xf32, #tpu.memory_space<vmem>>, %arg11: memref<1x128xf32, #tpu.memory_space<vmem>>, %arg12: memref<1x128xf32, #tpu.memory_space<vmem>>) attributes {dimension_semantics = [#tpu.dimension_semantics<arbitrary>], iteration_bounds = array<i64: 8>, scalar_prefetch = 1 : i64, scratch_operands = 1 : i64, tpu.core_type = #tpu.core_type<tc>, window_params = [{transform_indices = @transform_0, window_bounds = array<i64: 1, 1, 128>}, {pipeline_mode = #tpu.pipeline_mode<synchronous>, transform_indices = @transform_1, window_bounds = array<i64: 1, 128>}, {pipeline_mode = #tpu.pipeline_mode<synchronous>, transform_indices = @transform_2, window_bounds = array<i64: 256, 384>}, {pipeline_mode = #tpu.pipeline_mode<synchronous>, transform_indices = @transform_3, window_bounds = array<i64: 1, 384>}, {pipeline_mode = #tpu.pipeline_mode<synchronous>, transform_indices = @transform_4, window_bounds = array<i64: 128, 128>}, {pipeline_mode = #tpu.pipeline_mode<synchronous>, transform_indices = @transform_5, window_bounds = array<i64: 1, 128>}, {pipeline_mode = #tpu.pipeline_mode<synchronous>, transform_indices = @transform_6, window_bounds = array<i64: 128, 128>}, {pipeline_mode = #tpu.pipeline_mode<synchronous>, transform_indices = @transform_7, window_bounds = array<i64: 1, 128>}, {transform_indices = @transform_8, window_bounds = array<i64: 1, 1, 128>}, {pipeline_mode = #tpu.pipeline_mode<synchronous>, transform_indices = @transform_9, window_bounds = array<i64: 1, 128>}]} {
    %c0_i32 = arith.constant 0 : i32
    %0 = arith.cmpi eq, %arg0, %c0_i32 : i32
    %1 = arith.extui %0 : i1 to i32
    %c0_i32_0 = arith.constant 0 : i32
    %2 = arith.cmpi ne, %1, %c0_i32_0 : i32
    scf.if %2 {
      %c0_29 = arith.constant 0 : index
      %c0_30 = arith.constant 0 : index
      %49 = vector.load %arg3[%c0_29, %c0_30] : memref<1x128xf32, #tpu.memory_space<vmem>>, vector<1x128xf32>
      %c0_31 = arith.constant 0 : index
      %c0_32 = arith.constant 0 : index
      %50 = vector.load %arg12[%c0_31, %c0_32] : memref<1x128xf32, #tpu.memory_space<vmem>>, vector<1x128xf32>
      tpu.vector_store %arg12[%c0_31, %c0_32], %49 {strides = array<i32>} : memref<1x128xf32, #tpu.memory_space<vmem>>, vector<1x128xf32>,
    } else {
    }
    %c0 = arith.constant 0 : index
    %c0_1 = arith.constant 0 : index
    %c0_2 = arith.constant 0 : index
    %3 = vector.load %arg2[%c0, %c0_1, %c0_2] : memref<1x1x128xf32, #tpu.memory_space<vmem>>, vector<1x1x128xf32>
    %4 = vector.shape_cast %3 : vector<1x1x128xf32> to vector<1x128xf32>
    %c0_3 = arith.constant 0 : index
    %c0_4 = arith.constant 0 : index
    %5 = vector.load %arg12[%c0_3, %c0_4] : memref<1x128xf32, #tpu.memory_space<vmem>>, vector<1x128xf32>
    %6 = tpu.concatenate %4, %5 in 1 : vector<1x128xf32>, vector<1x128xf32> -> vector<1x256xf32>
    %c0_5 = arith.constant 0 : index
    %c0_6 = arith.constant 0 : index
    %7 = vector.load %arg4[%c0_5, %c0_6] : memref<256x384xf32, #tpu.memory_space<vmem>>, vector<256x384xf32>
    %cst = arith.constant dense<0.000000e+00> : vector<1x384xf32>
    %8 = tpu.matmul %6, %7, %cst {dimension_numbers = #tpu.dot_dimension_numbers<[1], [0], [0], [1], [0, 0, 1, 1], [], []>} : vector<1x256xf32>, vector<256x384xf32>, vector<1x384xf32> -> vector<1x384xf32>
    %c0_7 = arith.constant 0 : index
    %c0_8 = arith.constant 0 : index
    %9 = vector.load %arg5[%c0_7, %c0_8] : memref<1x384xf32, #tpu.memory_space<vmem>>, vector<1x384xf32>
    %10 = arith.addf %8, %9 : vector<1x384xf32>
    %c0_9 = arith.constant 0 : index
    %c0_10 = arith.constant 0 : index
    %11 = vector.load %arg6[%c0_9, %c0_10] : memref<128x128xf32, #tpu.memory_space<vmem>>, vector<128x128xf32>
    %cst_11 = arith.constant dense<0.000000e+00> : vector<1x128xf32>
    %12 = tpu.matmul %5, %11, %cst_11 {dimension_numbers = #tpu.dot_dimension_numbers<[1], [0], [0], [1], [0, 0, 1, 1], [], []>} : vector<1x128xf32>, vector<128x128xf32>, vector<1x128xf32> -> vector<1x128xf32>
    %c0_12 = arith.constant 0 : index
    %c0_13 = arith.constant 0 : index
    %13 = vector.load %arg7[%c0_12, %c0_13] : memref<1x128xf32, #tpu.memory_space<vmem>>, vector<1x128xf32>
    %14 = arith.addf %12, %13 : vector<1x128xf32>
    %15 = vector.extract_strided_slice %10 {offsets = [0, 0], sizes = [1, 128], strides = [1, 1]} : vector<1x384xf32> to vector<1x128xf32>
    %16 = arith.negf %15 : vector<1x128xf32>
    %17 = math.exp %16 : vector<1x128xf32>
    %cst_14 = arith.constant 1.000000e+00 : f32
    %18 = vector.broadcast %cst_14 : f32 to vector<1x128xf32>
    %19 = arith.addf %18, %17 : vector<1x128xf32>
    %20 = arith.divf %18, %19 : vector<1x128xf32>
    %21 = vector.extract_strided_slice %10 {offsets = [0, 128], sizes = [1, 128], strides = [1, 1]} : vector<1x384xf32> to vector<1x128xf32>
    %22 = arith.negf %21 : vector<1x128xf32>
    %23 = math.exp %22 : vector<1x128xf32>
    %cst_15 = arith.constant 1.000000e+00 : f32
    %24 = vector.broadcast %cst_15 : f32 to vector<1x128xf32>
    %25 = arith.addf %24, %23 : vector<1x128xf32>
    %26 = arith.divf %24, %25 : vector<1x128xf32>
    %27 = vector.extract_strided_slice %10 {offsets = [0, 256], sizes = [1, 128], strides = [1, 1]} : vector<1x384xf32> to vector<1x128xf32>
    %cst_16 = arith.constant 1.000000e+00 : f32
    %28 = vector.broadcast %cst_16 : f32 to vector<1x128xf32>
    %29 = arith.subf %20, %28 : vector<1x128xf32>
    %30 = arith.mulf %29, %14 : vector<1x128xf32>
    %31 = arith.addf %27, %30 : vector<1x128xf32>
    %32 = math.tanh %31 : vector<1x128xf32>
    %cst_17 = arith.constant 1.000000e+00 : f32
    %33 = vector.broadcast %cst_17 : f32 to vector<1x128xf32>
    %34 = arith.subf %33, %26 : vector<1x128xf32>
    %35 = arith.mulf %34, %32 : vector<1x128xf32>
    %36 = arith.mulf %26, %5 : vector<1x128xf32>
    %37 = arith.addf %35, %36 : vector<1x128xf32>
    %c0_18 = arith.constant 0 : index
    %c0_19 = arith.constant 0 : index
    %38 = vector.load %arg12[%c0_18, %c0_19] : memref<1x128xf32, #tpu.memory_space<vmem>>, vector<1x128xf32>
    tpu.vector_store %arg12[%c0_18, %c0_19], %37 {strides = array<i32>} : memref<1x128xf32, #tpu.memory_space<vmem>>, vector<1x128xf32>,
    %c0_20 = arith.constant 0 : index
    %c0_21 = arith.constant 0 : index
    %39 = vector.load %arg8[%c0_20, %c0_21] : memref<128x128xf32, #tpu.memory_space<vmem>>, vector<128x128xf32>
    %cst_22 = arith.constant dense<0.000000e+00> : vector<1x128xf32>
    %40 = tpu.matmul %37, %39, %cst_22 {dimension_numbers = #tpu.dot_dimension_numbers<[1], [0], [0], [1], [0, 0, 1, 1], [], []>} : vector<1x128xf32>, vector<128x128xf32>, vector<1x128xf32> -> vector<1x128xf32>
    %c0_23 = arith.constant 0 : index
    %c0_24 = arith.constant 0 : index
    %41 = vector.load %arg9[%c0_23, %c0_24] : memref<1x128xf32, #tpu.memory_space<vmem>>, vector<1x128xf32>
    %42 = arith.addf %40, %41 : vector<1x128xf32>
    %c0_25 = arith.constant 0 : index
    %c0_26 = arith.constant 0 : index
    %c0_27 = arith.constant 0 : index
    %43 = vector.load %arg10[%c0_25, %c0_26, %c0_27] : memref<1x1x128xf32, #tpu.memory_space<vmem>>, vector<1x1x128xf32>
    %44 = vector.shape_cast %43 : vector<1x1x128xf32> to vector<1x128xf32>
    %45 = vector.shape_cast %42 : vector<1x128xf32> to vector<1x1x128xf32>
    tpu.vector_store %arg10[%c0_25, %c0_26, %c0_27], %45 {strides = array<i32>} : memref<1x1x128xf32, #tpu.memory_space<vmem>>, vector<1x1x128xf32>,
    %c7_i32 = arith.constant 7 : i32
    %46 = arith.cmpi eq, %arg0, %c7_i32 : i32
    %47 = arith.extui %46 : i1 to i32
    %c0_i32_28 = arith.constant 0 : i32
    %48 = arith.cmpi ne, %47, %c0_i32_28 : i32
    scf.if %48 {
      %c0_29 = arith.constant 0 : index
      %c0_30 = arith.constant 0 : index
      %49 = vector.load %arg11[%c0_29, %c0_30] : memref<1x128xf32, #tpu.memory_space<vmem>>, vector<1x128xf32>
      tpu.vector_store %arg11[%c0_29, %c0_30], %37 {strides = array<i32>} : memref<1x128xf32, #tpu.memory_space<vmem>>, vector<1x128xf32>,
    } else {
    }
    return
  }
  func.func @transform_0(%arg0: i32, %arg1: memref<8xi32, #tpu.memory_space<smem>>) -> (i32, i32, i32) {
    %0 = arith.index_cast %arg0 : i32 to index
    %1 = memref.load %arg1[%0] : memref<8xi32, #tpu.memory_space<smem>>
    %c0_i32 = arith.constant 0 : i32
    %c0_i32_0 = arith.constant 0 : i32
    %c0_i32_1 = arith.constant 0 : i32
    return %1, %c0_i32, %c0_i32_0 : i32, i32, i32
  }
  func.func @transform_1(%arg0: i32, %arg1: memref<8xi32, #tpu.memory_space<smem>>) -> (i32, i32) {
    %c0_i32 = arith.constant 0 : i32
    %c0_i32_0 = arith.constant 0 : i32
    %c0_i32_1 = arith.constant 0 : i32
    return %c0_i32, %c0_i32_0 : i32, i32
  }
  func.func @transform_2(%arg0: i32, %arg1: memref<8xi32, #tpu.memory_space<smem>>) -> (i32, i32) {
    %c0_i32 = arith.constant 0 : i32
    %c0_i32_0 = arith.constant 0 : i32
    %c0_i32_1 = arith.constant 0 : i32
    return %c0_i32, %c0_i32_0 : i32, i32
  }
  func.func @transform_3(%arg0: i32, %arg1: memref<8xi32, #tpu.memory_space<smem>>) -> (i32, i32) {
    %c0_i32 = arith.constant 0 : i32
    %c0_i32_0 = arith.constant 0 : i32
    %c0_i32_1 = arith.constant 0 : i32
    return %c0_i32, %c0_i32_0 : i32, i32
  }
  func.func @transform_4(%arg0: i32, %arg1: memref<8xi32, #tpu.memory_space<smem>>) -> (i32, i32) {
    %c0_i32 = arith.constant 0 : i32
    %c0_i32_0 = arith.constant 0 : i32
    %c0_i32_1 = arith.constant 0 : i32
    return %c0_i32, %c0_i32_0 : i32, i32
  }
  func.func @transform_5(%arg0: i32, %arg1: memref<8xi32, #tpu.memory_space<smem>>) -> (i32, i32) {
    %c0_i32 = arith.constant 0 : i32
    %c0_i32_0 = arith.constant 0 : i32
    %c0_i32_1 = arith.constant 0 : i32
    return %c0_i32, %c0_i32_0 : i32, i32
  }
  func.func @transform_6(%arg0: i32, %arg1: memref<8xi32, #tpu.memory_space<smem>>) -> (i32, i32) {
    %c0_i32 = arith.constant 0 : i32
    %c0_i32_0 = arith.constant 0 : i32
    %c0_i32_1 = arith.constant 0 : i32
    return %c0_i32, %c0_i32_0 : i32, i32
  }
  func.func @transform_7(%arg0: i32, %arg1: memref<8xi32, #tpu.memory_space<smem>>) -> (i32, i32) {
    %c0_i32 = arith.constant 0 : i32
    %c0_i32_0 = arith.constant 0 : i32
    %c0_i32_1 = arith.constant 0 : i32
    return %c0_i32, %c0_i32_0 : i32, i32
  }
  func.func @transform_8(%arg0: i32, %arg1: memref<8xi32, #tpu.memory_space<smem>>) -> (i32, i32, i32) {
    %c0_i32 = arith.constant 0 : i32
    %c0_i32_0 = arith.constant 0 : i32
    %c0_i32_1 = arith.constant 0 : i32
    return %arg0, %c0_i32, %c0_i32_0 : i32, i32, i32
  }
  func.func @transform_9(%arg0: i32, %arg1: memref<8xi32, #tpu.memory_space<smem>>) -> (i32, i32) {
    %c0_i32 = arith.constant 0 : i32
    %c0_i32_0 = arith.constant 0 : i32
    %c0_i32_1 = arith.constant 0 : i32
    return %c0_i32, %c0_i32_0 : i32, i32
  }
}

</mosaic_0001>

<llo_original>
// kernel: tpu_custom_call.1
$region0: #{tpu_custom_call.1}
  #allocation0 [shape = 'u32[]', space=smem, size = 0x4, offset = 0x4, fixed_abs, tag = 'smem constant byte address 0x4 - core index']
  #allocation1 [shape = 'u32[144,128]{1,0:T(1,128)}', space=vmem, size = 0x12000, scoped, tag = 'internal scratch']
  #allocation2 [shape = 'f32[1,128]{1,0:T(1,128)}', space=vmem, size = 0x200, scoped, tag = 'scratch operand']
  #allocation3 [shape = 's32[1]{0}', space=sflag, size = 0x4, scoped, tag = 'scoped memory for tpu_custom_call.1']
  #allocation4 [shape = 'u8[512]{0}', space=smem, size = 0x200, scoped, tag = 'prefetched SMEM operand 0']
  %s0 = inlined_call_operand.hbm [shape: s32[8], index: 0, kind: input, shape index: {}]
  %s1 = inlined_call_operand.hbm [shape: f32[100,1,128], index: 1, kind: input, shape index: {}]
  %s2 = inlined_call_operand.vmem [shape: f32[1,128], index: 2, kind: input, shape index: {}]
  %s3 = inlined_call_operand.hbm [shape: f32[256,384], index: 3, kind: input, shape index: {}]
  %s4 = inlined_call_operand.vmem [shape: f32[1,384], index: 4, kind: input, shape index: {}]
  %s5 = inlined_call_operand.hbm [shape: f32[128,128], index: 5, kind: input, shape index: {}]
  %s6 = inlined_call_operand.vmem [shape: f32[1,128], index: 6, kind: input, shape index: {}]
  %s7 = inlined_call_operand.hbm [shape: f32[128,128], index: 7, kind: input, shape index: {}]
  %s8 = inlined_call_operand.vmem [shape: f32[1,128], index: 8, kind: input, shape index: {}]
  %s9 = inlined_call_operand.hbm [shape: f32[8,1,128], index: 9, kind: output, shape index: {0}]
  %s10 = inlined_call_operand.hbm [shape: f32[1,128], index: 10, kind: output, shape index: {1}]
  %11 = xla_tuple %s9, %s10
  %s12 = sld [smem:[#allocation0]]
  $region97: #{tpu_custom_call.1} parent=0
    _
  %s14 = ssub.s32 1, %s12
  %s15 = scalar_select 0, %s14, %s12
  %17 = dma.hbm_to_smem %s0, 16, [#allocation4], [#allocation3]
  %18 = dma.done [#allocation3], 16
  %19 = sfence
  $region1: #{tpu_custom_call.1} parent=0
    #allocation5 [shape = 'u8[1024]{0}', space=vmem, size = 0x400, scoped, tag = 'input window, operand 1']
    #allocation6 [shape = 's32[2]{0}', space=sflag, size = 0x8, scoped, tag = 'scoped memory for tpu_custom_call.1']
    #allocation7 [shape = 's32[2]{0}', space=sflag, size = 0x8, scoped, tag = 'scoped memory for tpu_custom_call.1']
    #allocation8 [shape = 'u8[393216]{0}', space=vmem, size = 0x60000, scoped, tag = 'input window, operand 3, single buffered']
    #allocation9 [shape = 's32[1]{0}', space=sflag, size = 0x4, scoped, tag = 'scoped memory for tpu_custom_call.1']
    #allocation10 [shape = 'u8[65536]{0}', space=vmem, size = 0x10000, scoped, tag = 'input window, operand 5, single buffered']
    #allocation11 [shape = 'u8[65536]{0}', space=vmem, size = 0x10000, scoped, tag = 'input window, operand 7, single buffered']
    #allocation12 [shape = 's32[1]{0}', space=sflag, size = 0x4, scoped, tag = 'scoped memory for tpu_custom_call.1']
    #allocation13 [shape = 'u8[1024]{0}', space=vmem, size = 0x400, scoped, tag = 'output window, operand 0']
    #allocation14 [shape = 'u8[512]{0}', space=vmem, size = 0x400, scoped, tag = 'output window, operand 1, single buffered']
    #allocation15 [shape = 's32[1]{0}', space=sflag, size = 0x4, scoped, tag = 'scoped memory for tpu_custom_call.1']
    %20 = vsyncpa [#allocation6], 0
    %s21 = scalar_lea.sflag [#allocation6], 1
    %22 = vsyncpa %s21, 0
    %23 = vsyncpa [#allocation9], 0
    %24 = vsyncpa [#allocation12], 0
    %25 = vsyncpa [#allocation7], 0
    %s26 = scalar_lea.sflag [#allocation7], 1
    %27 = vsyncpa %s26, 0
    %28 = vsyncpa [#allocation15], 0
    loop: start=0, step=1, limit=10
    $region2: #{tpu_custom_call.1} parent=1 // loop_pre_header
      _
    $region3: #{tpu_custom_call.1} parent=1 // loop_header
      %s30 = sphi 0, %s34
      %p31 = scmp.ge.s32.totalorder %s30, 10
      %s42 = sphi 0, %s44
      %s45 = sphi 0, %s42
      %s46 = sphi 0, %s45
      %s62 = sphi 0, %s46
      %s66 = sphi 0, %s66
      %s68 = sphi 0, %s66
      %s69 = sphi 0, %s68
      %s83 = sphi 0, %s69
      %s87 = sphi 0, %s87
      %s89 = sphi 0, %s87
      %s90 = sphi 0, %s89
      %s104 = sphi 0, %s90
      %s108 = sphi 0, %s108
      %s110 = sphi 0, %s108
      %s111 = sphi 0, %s110
      %s125 = sphi 0, %s111
      %s129 = sphi 0, %s129
      %s131 = sphi 0, %s129
      %s132 = sphi 0, %s131
      %s146 = sphi 0, %s132
      %s150 = sphi 0, %s150
      %s152 = sphi 0, %s150
      %s153 = sphi 0, %s152
      %s167 = sphi 0, %s153
      %s171 = sphi 0, %s171
      %s173 = sphi 0, %s171
      %s174 = sphi 0, %s173
      %s188 = sphi 0, %s174
      %s192 = sphi 0, %s192
      %s194 = sphi 0, %s192
      %s195 = sphi 0, %s194
      %s209 = sphi 0, %s195
      %s215 = sphi 0, %s217
      %s218 = sphi 0, %s215
      %s219 = sphi 0, %s218
      %s235 = sphi 0, %s219
      %s239 = sphi 0, %s239
      %s241 = sphi 0, %s239
      %s242 = sphi 0, %s241
      %s256 = sphi 0, %s242
    $region4: #{tpu_custom_call.1} parent=1 // loop_header_branch
      %33 = sbr.rel (%p31) target = $region8
    $region5: #{tpu_custom_call.1} parent=1 // loop_body
      %s35 = ssub.s32 %s30, 1
      %s36 = ssub.s32 %s30, 2
      %s37 = sadd.s32 %s30, 1
      %s38 = sld [smem:[#allocation4 + %s30]]
      %s39 = sld [smem:[#allocation4 + %s37]]
      %s40 = ssub.s32 %s38, %s39
      %p41 = scmp.eq.s32.totalorder %s40, 0
      %s43 = sadd.s32 %s42, 1
      %s44 = scalar_select %p41, %s42, %s43
      %p47 = pneg %p41
      %p48 = scmp.eq.s32.totalorder %s30, 7
      %p49 = por %p47, %p48
      %p50 = scmp.ne.s32.totalorder %s42, %s45
      %p51 = scmp.eq.s32.totalorder %s30, 0
      %p52 = por %p50, %p51
      %p53 = scmp.ne.s32.totalorder %s42, %s45
      %p54 = scmp.eq.s32.totalorder %s35, 7
      %p55 = por %p53, %p54
      %p56 = scmp.ne.s32.totalorder %s45, %s46
      %p57 = scmp.eq.s32.totalorder %s35, 0
      %p58 = por %p56, %p57
      %p59 = scmp.ne.s32.totalorder %s45, %s46
      %p60 = scmp.eq.s32.totalorder %s36, 7
      %p61 = por %p59, %p60
      %p63 = scmp.ne.s32.totalorder %s46, %s62
      %p64 = scmp.eq.s32.totalorder %s36, 0
      %p65 = por %p63, %p64
      %s67 = sadd.s32 %s66, 1
      %p70 = scmp.eq.s32.totalorder %s30, 7
      %p71 = scmp.ne.s32.totalorder %s66, %s68
      %p72 = scmp.eq.s32.totalorder %s30, 0
      %p73 = por %p71, %p72
      %p74 = scmp.ne.s32.totalorder %s66, %s68
      %p75 = scmp.eq.s32.totalorder %s35, 7
      %p76 = por %p74, %p75
      %p77 = scmp.ne.s32.totalorder %s68, %s69
      %p78 = scmp.eq.s32.totalorder %s35, 0
      %p79 = por %p77, %p78
      %p80 = scmp.ne.s32.totalorder %s68, %s69
      %p81 = scmp.eq.s32.totalorder %s36, 7
      %p82 = por %p80, %p81
      %p84 = scmp.ne.s32.totalorder %s69, %s83
      %p85 = scmp.eq.s32.totalorder %s36, 0
      %p86 = por %p84, %p85
      %s88 = sadd.s32 %s87, 1
      %p91 = scmp.eq.s32.totalorder %s30, 7
      %p92 = scmp.ne.s32.totalorder %s87, %s89
      %p93 = scmp.eq.s32.totalorder %s30, 0
      %p94 = por %p92, %p93
      %p95 = scmp.ne.s32.totalorder %s87, %s89
      %p96 = scmp.eq.s32.totalorder %s35, 7
      %p97 = por %p95, %p96
      %p98 = scmp.ne.s32.totalorder %s89, %s90
      %p99 = scmp.eq.s32.totalorder %s35, 0
      %p100 = por %p98, %p99
      %p101 = scmp.ne.s32.totalorder %s89, %s90
      %p102 = scmp.eq.s32.totalorder %s36, 7
      %p103 = por %p101, %p102
      %p105 = scmp.ne.s32.totalorder %s90, %s104
      %p106 = scmp.eq.s32.totalorder %s36, 0
      %p107 = por %p105, %p106
      %s109 = sadd.s32 %s108, 1
      %p112 = scmp.eq.s32.totalorder %s30, 7
      %p113 = scmp.ne.s32.totalorder %s108, %s110
      %p114 = scmp.eq.s32.totalorder %s30, 0
      %p115 = por %p113, %p114
      %p116 = scmp.ne.s32.totalorder %s108, %s110
      %p117 = scmp.eq.s32.totalorder %s35, 7
      %p118 = por %p116, %p117
      %p119 = scmp.ne.s32.totalorder %s110, %s111
      %p120 = scmp.eq.s32.totalorder %s35, 0
      %p121 = por %p119, %p120
      %p122 = scmp.ne.s32.totalorder %s110, %s111
      %p123 = scmp.eq.s32.totalorder %s36, 7
      %p124 = por %p122, %p123
      %p126 = scmp.ne.s32.totalorder %s111, %s125
      %p127 = scmp.eq.s32.totalorder %s36, 0
      %p128 = por %p126, %p127
      %s130 = sadd.s32 %s129, 1
      %p133 = scmp.eq.s32.totalorder %s30, 7
      %p134 = scmp.ne.s32.totalorder %s129, %s131
      %p135 = scmp.eq.s32.totalorder %s30, 0
      %p136 = por %p134, %p135
      %p137 = scmp.ne.s32.totalorder %s129, %s131
      %p138 = scmp.eq.s32.totalorder %s35, 7
      %p139 = por %p137, %p138
      %p140 = scmp.ne.s32.totalorder %s131, %s132
      %p141 = scmp.eq.s32.totalorder %s35, 0
      %p142 = por %p140, %p141
      %p143 = scmp.ne.s32.totalorder %s131, %s132
      %p144 = scmp.eq.s32.totalorder %s36, 7
      %p145 = por %p143, %p144
      %p147 = scmp.ne.s32.totalorder %s132, %s146
      %p148 = scmp.eq.s32.totalorder %s36, 0
      %p149 = por %p147, %p148
      %s151 = sadd.s32 %s150, 1
      %p154 = scmp.eq.s32.totalorder %s30, 7
      %p155 = scmp.ne.s32.totalorder %s150, %s152
      %p156 = scmp.eq.s32.totalorder %s30, 0
      %p157 = por %p155, %p156
      %p158 = scmp.ne.s32.totalorder %s150, %s152
      %p159 = scmp.eq.s32.totalorder %s35, 7
      %p160 = por %p158, %p159
      %p161 = scmp.ne.s32.totalorder %s152, %s153
      %p162 = scmp.eq.s32.totalorder %s35, 0
      %p163 = por %p161, %p162
      %p164 = scmp.ne.s32.totalorder %s152, %s153
      %p165 = scmp.eq.s32.totalorder %s36, 7
      %p166 = por %p164, %p165
      %p168 = scmp.ne.s32.totalorder %s153, %s167
      %p169 = scmp.eq.s32.totalorder %s36, 0
      %p170 = por %p168, %p169
      %s172 = sadd.s32 %s171, 1
      %p175 = scmp.eq.s32.totalorder %s30, 7
      %p176 = scmp.ne.s32.totalorder %s171, %s173
      %p177 = scmp.eq.s32.totalorder %s30, 0
      %p178 = por %p176, %p177
      %p179 = scmp.ne.s32.totalorder %s171, %s173
      %p180 = scmp.eq.s32.totalorder %s35, 7
      %p181 = por %p179, %p180
      %p182 = scmp.ne.s32.totalorder %s173, %s174
      %p183 = scmp.eq.s32.totalorder %s35, 0
      %p184 = por %p182, %p183
      %p185 = scmp.ne.s32.totalorder %s173, %s174
      %p186 = scmp.eq.s32.totalorder %s36, 7
      %p187 = por %p185, %p186
      %p189 = scmp.ne.s32.totalorder %s174, %s188
      %p190 = scmp.eq.s32.totalorder %s36, 0
      %p191 = por %p189, %p190
      %s193 = sadd.s32 %s192, 1
      %p196 = scmp.eq.s32.totalorder %s30, 7
      %p197 = scmp.ne.s32.totalorder %s192, %s194
      %p198 = scmp.eq.s32.totalorder %s30, 0
      %p199 = por %p197, %p198
      %p200 = scmp.ne.s32.totalorder %s192, %s194
      %p201 = scmp.eq.s32.totalorder %s35, 7
      %p202 = por %p200, %p201
      %p203 = scmp.ne.s32.totalorder %s194, %s195
      %p204 = scmp.eq.s32.totalorder %s35, 0
      %p205 = por %p203, %p204
      %p206 = scmp.ne.s32.totalorder %s194, %s195
      %p207 = scmp.eq.s32.totalorder %s36, 7
      %p208 = por %p206, %p207
      %p210 = scmp.ne.s32.totalorder %s195, %s209
      %p211 = scmp.eq.s32.totalorder %s36, 0
      %p212 = por %p210, %p211
      %s213 = ssub.s32 %s30, %s37
      %p214 = scmp.eq.s32.totalorder %s213, 0
      %s216 = sadd.s32 %s215, 1
      %s217 = scalar_select %p214, %s215, %s216
      %p220 = pneg %p214
      %p221 = scmp.eq.s32.totalorder %s30, 7
      %p222 = por %p220, %p221
      %p223 = scmp.ne.s32.totalorder %s215, %s218
      %p224 = scmp.eq.s32.totalorder %s30, 0
      %p225 = por %p223, %p224
      %p226 = scmp.ne.s32.totalorder %s215, %s218
      %p227 = scmp.eq.s32.totalorder %s35, 7
      %p228 = por %p226, %p227
      %p229 = scmp.ne.s32.totalorder %s218, %s219
      %p230 = scmp.eq.s32.totalorder %s35, 0
      %p231 = por %p229, %p230
      %p232 = scmp.ne.s32.totalorder %s218, %s219
      %p233 = scmp.eq.s32.totalorder %s36, 7
      %p234 = por %p232, %p233
      %p236 = scmp.ne.s32.totalorder %s219, %s235
      %p237 = scmp.eq.s32.totalorder %s36, 0
      %p238 = por %p236, %p237
      %s240 = sadd.s32 %s239, 1
      %p243 = scmp.eq.s32.totalorder %s30, 7
      %p244 = scmp.ne.s32.totalorder %s239, %s241
      %p245 = scmp.eq.s32.totalorder %s30, 0
      %p246 = por %p244, %p245
      %p247 = scmp.ne.s32.totalorder %s239, %s241
      %p248 = scmp.eq.s32.totalorder %s35, 7
      %p249 = por %p247, %p248
      %p250 = scmp.ne.s32.totalorder %s241, %s242
      %p251 = scmp.eq.s32.totalorder %s35, 0
      %p252 = por %p250, %p251
      %p253 = scmp.ne.s32.totalorder %s241, %s242
      %p254 = scmp.eq.s32.totalorder %s36, 7
      %p255 = por %p253, %p254
      %p257 = scmp.ne.s32.totalorder %s242, %s256
      %p258 = scmp.eq.s32.totalorder %s36, 0
      %p259 = por %p257, %p258
      %p260 = scmp.le.s32.totalorder 1, %s30
      %p261 = scmp.lt.s32.totalorder %s30, 9
      %p262 = pnand %p260, %p261
      %p263 = pneg %p262
      // Predicated region
      $region9: #{tpu_custom_call.1} parent=5 // pred_check
        _
      $region10: #{tpu_custom_call.1} parent=5 // pred_check_branch
        %265 = sbr.rel (%p262) target = $region12
      $region11: #{tpu_custom_call.1} parent=5 // pred_region
        %s266 = ssub.s32 %s30, 1
        // Predicated region
        $region13: #{tpu_custom_call.1} parent=11 // pred_check
          %p267 = pneg %p79
        $region14: #{tpu_custom_call.1} parent=11 // pred_check_branch
          %269 = sbr.rel (%p267) target = $region16
        $region15: #{tpu_custom_call.1} parent=11 // pred_region
          _
        $region16: #{tpu_custom_call.1} parent=11 // pred_fallthru
          _
        // Predicated region
        $region17: #{tpu_custom_call.1} parent=11 // pred_check
          %p270 = pneg %p100
        $region18: #{tpu_custom_call.1} parent=11 // pred_check_branch
          %272 = sbr.rel (%p270) target = $region20
        $region19: #{tpu_custom_call.1} parent=11 // pred_region
          %s274 = ssub.s32 12288, 12288
          %275 = vsyncadd [#allocation9], %s274
          %s276 = sshll.u32 [#allocation8], 4
          %s277 = int_to_ptr.vmem [resolvable:$true] %s276
          %282 = dma.hbm_to_vmem [thread:$0]  %s3, 12288, %s277, [#allocation9], 384, 384, 24
        $region20: #{tpu_custom_call.1} parent=11 // pred_fallthru
          _
        // Predicated region
        $region21: #{tpu_custom_call.1} parent=11 // pred_check
          %p283 = pneg %p121
        $region22: #{tpu_custom_call.1} parent=11 // pred_check_branch
          %285 = sbr.rel (%p283) target = $region24
        $region23: #{tpu_custom_call.1} parent=11 // pred_region
          _
        $region24: #{tpu_custom_call.1} parent=11 // pred_fallthru
          _
        // Predicated region
        $region25: #{tpu_custom_call.1} parent=11 // pred_check
          %p286 = pneg %p142
        $region26: #{tpu_custom_call.1} parent=11 // pred_check_branch
          %288 = sbr.rel (%p286) target = $region28
        $region27: #{tpu_custom_call.1} parent=11 // pred_region
          %s290 = ssub.s32 2048, 2048
          %291 = vsyncadd [#allocation9], %s290
          %s292 = sshll.u32 [#allocation10], 4
          %s293 = int_to_ptr.vmem [resolvable:$true] %s292
          %298 = dma.hbm_to_vmem [thread:$0]  %s5, 2048, %s293, [#allocation9], 128, 128, 8
        $region28: #{tpu_custom_call.1} parent=11 // pred_fallthru
          _
        // Predicated region
        $region29: #{tpu_custom_call.1} parent=11 // pred_check
          %p299 = pneg %p163
        $region30: #{tpu_custom_call.1} parent=11 // pred_check_branch
          %301 = sbr.rel (%p299) target = $region32
        $region31: #{tpu_custom_call.1} parent=11 // pred_region
          _
        $region32: #{tpu_custom_call.1} parent=11 // pred_fallthru
          _
        // Predicated region
        $region33: #{tpu_custom_call.1} parent=11 // pred_check
          %p302 = pneg %p184
        $region34: #{tpu_custom_call.1} parent=11 // pred_check_branch
          %304 = sbr.rel (%p302) target = $region36
        $region35: #{tpu_custom_call.1} parent=11 // pred_region
          %s306 = ssub.s32 2048, 2048
          %307 = vsyncadd [#allocation12], %s306
          %s308 = sshll.u32 [#allocation11], 4
          %s309 = int_to_ptr.vmem [resolvable:$true] %s308
          %314 = dma.hbm_to_vmem [thread:$0]  %s7, 2048, %s309, [#allocation12], 128, 128, 8
        $region36: #{tpu_custom_call.1} parent=11 // pred_fallthru
          _
        // Predicated region
        $region37: #{tpu_custom_call.1} parent=11 // pred_check
          %p315 = pneg %p205
        $region38: #{tpu_custom_call.1} parent=11 // pred_check_branch
          %317 = sbr.rel (%p315) target = $region40
        $region39: #{tpu_custom_call.1} parent=11 // pred_region
          _
        $region40: #{tpu_custom_call.1} parent=11 // pred_fallthru
          _
      $region12: #{tpu_custom_call.1} parent=5 // pred_fallthru
        _
      %p318 = scmp.lt.s32.totalorder %s30, 8
      // Predicated region
      $region41: #{tpu_custom_call.1} parent=5 // pred_check
        %p319 = pneg %p318
      $region42: #{tpu_custom_call.1} parent=5 // pred_check_branch
        %321 = sbr.rel (%p319) target = $region44
      $region43: #{tpu_custom_call.1} parent=5 // pred_region
        // Predicated region
        $region45: #{tpu_custom_call.1} parent=43 // pred_check
          %p322 = pneg %p52
        $region46: #{tpu_custom_call.1} parent=43 // pred_check_branch
          %324 = sbr.rel (%p322) target = $region48
        $region47: #{tpu_custom_call.1} parent=43 // pred_region
          %s325 = sand.u32 %s42, 1
          %s326 = scalar_lea.sflag [#allocation6], %s325
          %s327 = sand.u32 %s42, 1
          %s328 = scalar_lea.vmem [#allocation5], %s327
          %s329 = sld [smem:[#allocation4 + %s30]]
          %s331 = ssub.s32 16, 16
          %332 = vsyncadd %s326, %s331
          %s333 = smul.addr %s329, 16
          %s334 = scalar_lea.hbm %s1, %s333
          %s336 = sshll.u32 %s328, 4
          %s337 = int_to_ptr.vmem [resolvable:$true] %s336
          %339 = dma.hbm_to_vmem [thread:$0]  %s334, 16, %s337, %s326
        $region48: #{tpu_custom_call.1} parent=43 // pred_fallthru
          _
      $region44: #{tpu_custom_call.1} parent=5 // pred_fallthru
        _
      %p340 = scmp.le.s32.totalorder 1, %s30
      %p341 = scmp.lt.s32.totalorder %s30, 9
      %p342 = pnand %p340, %p341
      %p343 = pneg %p342
      // Predicated region
      $region49: #{tpu_custom_call.1} parent=5 // pred_check
        _
      $region50: #{tpu_custom_call.1} parent=5 // pred_check_branch
        %345 = sbr.rel (%p342) target = $region52
      $region51: #{tpu_custom_call.1} parent=5 // pred_region
        %s346 = ssub.s32 %s30, 1
        %s347 = sand.u32 %s45, 1
        %s348 = scalar_lea.sflag [#allocation6], %s347
        %s349 = sand.u32 %s45, 1
        %s350 = scalar_lea.vmem [#allocation5], %s349
        // Predicated region
        $region53: #{tpu_custom_call.1} parent=51 // pred_check
          %p351 = pneg %p58
        $region54: #{tpu_custom_call.1} parent=51 // pred_check_branch
          %353 = sbr.rel (%p351) target = $region56
        $region55: #{tpu_custom_call.1} parent=51 // pred_region
          %354 = dma.done %s348, 16
        $region56: #{tpu_custom_call.1} parent=51 // pred_fallthru
          _
        // Predicated region
        $region57: #{tpu_custom_call.1} parent=51 // pred_check
          %p355 = pneg %p100
        $region58: #{tpu_custom_call.1} parent=51 // pred_check_branch
          %357 = sbr.rel (%p355) target = $region60
        $region59: #{tpu_custom_call.1} parent=51 // pred_region
          %358 = dma.done [#allocation9], 12288
        $region60: #{tpu_custom_call.1} parent=51 // pred_fallthru
          _
        // Predicated region
        $region61: #{tpu_custom_call.1} parent=51 // pred_check
          %p359 = pneg %p142
        $region62: #{tpu_custom_call.1} parent=51 // pred_check_branch
          %361 = sbr.rel (%p359) target = $region64
        $region63: #{tpu_custom_call.1} parent=51 // pred_region
          %362 = dma.done [#allocation9], 2048
        $region64: #{tpu_custom_call.1} parent=51 // pred_fallthru
          _
        // Predicated region
        $region65: #{tpu_custom_call.1} parent=51 // pred_check
          %p363 = pneg %p184
        $region66: #{tpu_custom_call.1} parent=51 // pred_check_branch
          %365 = sbr.rel (%p363) target = $region68
        $region67: #{tpu_custom_call.1} parent=51 // pred_region
          %366 = dma.done [#allocation12], 2048
        $region68: #{tpu_custom_call.1} parent=51 // pred_fallthru
          _
        %s367 = sand.u32 %s45, 1
        %s368 = scalar_lea.sflag [#allocation6], %s367
        %s369 = sand.u32 %s45, 1
        %s370 = scalar_lea.vmem [#allocation5], %s369
        %p371 = pneg %p58
        %p372 = pneg %p55
        %p373 = pneg %p79
        %p374 = pneg %p76
        %p375 = pneg %p100
        %p376 = pneg %p97
        %p377 = pneg %p121
        %p378 = pneg %p118
        %p379 = pneg %p142
        %p380 = pneg %p139
        %p381 = pneg %p163
        %p382 = pneg %p160
        %p383 = pneg %p184
        %p384 = pneg %p181
        %p385 = pneg %p205
        %p386 = pneg %p202
        %p387 = pneg %p231
        %p388 = pneg %p228
        %s389 = sand.u32 %s218, 1
        %s390 = scalar_lea.sflag [#allocation7], %s389
        %s391 = sand.u32 %s218, 1
        %s392 = scalar_lea.vmem [#allocation13], %s391
        %p393 = pneg %p252
        %p394 = pneg %p249
        %s395 = sld [smem:[#allocation4 + %s35]]
        %p396 = scmp.eq.s32.totalorder %s35, 0
        // Predicated region
        $region69: #{tpu_custom_call.1} parent=51 // pred_check
          %p397 = pneg %p396
        $region70: #{tpu_custom_call.1} parent=51 // pred_check_branch
          %399 = sbr.rel (%p397) target = $region72
        $region71: #{tpu_custom_call.1} parent=51 // pred_region
          %v400 = vld [vmem:[%s2] sm:$0x1]
          %401 = vst [vmem:[#allocation2] sm:$0x1] %v400
        $region72: #{tpu_custom_call.1} parent=51 // pred_fallthru
          _
        %v402 = vld [vmem:[%s350] sm:$0x1]
        %v403 = vld [vmem:[#allocation2] sm:$0x1]
        %v404 = vld [vmem:[#allocation8] sm:$0xff]
        %v405 = vld [vmem:[#allocation8 + $0x8] sm:$0xff]
        %v406 = vld [vmem:[#allocation8 + $0x10] sm:$0xff]
        %v407 = vld [vmem:[#allocation8 + $0x18] sm:$0xff]
        %v408 = vld [vmem:[#allocation8 + $0x20] sm:$0xff]
        %v409 = vld [vmem:[#allocation8 + $0x28] sm:$0xff]
        %v410 = vld [vmem:[#allocation8 + $0x30] sm:$0xff]
        %v411 = vld [vmem:[#allocation8 + $0x38] sm:$0xff]
        %v412 = vld [vmem:[#allocation8 + $0x40] sm:$0xff]
        %v413 = vld [vmem:[#allocation8 + $0x48] sm:$0xff]
        %v414 = vld [vmem:[#allocation8 + $0x50] sm:$0xff]
        %v415 = vld [vmem:[#allocation8 + $0x58] sm:$0xff]
        %v416 = vld [vmem:[#allocation8 + $0x60] sm:$0xff]
        %v417 = vld [vmem:[#allocation8 + $0x68] sm:$0xff]
        %v418 = vld [vmem:[#allocation8 + $0x70] sm:$0xff]
        %v419 = vld [vmem:[#allocation8 + $0x78] sm:$0xff]
        %v420 = vld [vmem:[#allocation8 + $0x80] sm:$0xff]
        %v421 = vld [vmem:[#allocation8 + $0x88] sm:$0xff]
        %v422 = vld [vmem:[#allocation8 + $0x90] sm:$0xff]
        %v423 = vld [vmem:[#allocation8 + $0x98] sm:$0xff]
        %v424 = vld [vmem:[#allocation8 + $0xa0] sm:$0xff]
        %v425 = vld [vmem:[#allocation8 + $0xa8] sm:$0xff]
        %v426 = vld [vmem:[#allocation8 + $0xb0] sm:$0xff]
        %v427 = vld [vmem:[#allocation8 + $0xb8] sm:$0xff]
        %v428 = vld [vmem:[#allocation8 + $0xc0] sm:$0xff]
        %v429 = vld [vmem:[#allocation8 + $0xc8] sm:$0xff]
        %v430 = vld [vmem:[#allocation8 + $0xd0] sm:$0xff]
        %v431 = vld [vmem:[#allocation8 + $0xd8] sm:$0xff]
        %v432 = vld [vmem:[#allocation8 + $0xe0] sm:$0xff]
        %v433 = vld [vmem:[#allocation8 + $0xe8] sm:$0xff]
        %v434 = vld [vmem:[#allocation8 + $0xf0] sm:$0xff]
        %v435 = vld [vmem:[#allocation8 + $0xf8] sm:$0xff]
        %v436 = vld [vmem:[#allocation8 + $0x100] sm:$0xff]
        %v437 = vld [vmem:[#allocation8 + $0x108] sm:$0xff]
        %v438 = vld [vmem:[#allocation8 + $0x110] sm:$0xff]
        %v439 = vld [vmem:[#allocation8 + $0x118] sm:$0xff]
        %v440 = vld [vmem:[#allocation8 + $0x120] sm:$0xff]
        %v441 = vld [vmem:[#allocation8 + $0x128] sm:$0xff]
        %v442 = vld [vmem:[#allocation8 + $0x130] sm:$0xff]
        %v443 = vld [vmem:[#allocation8 + $0x138] sm:$0xff]
        %v444 = vld [vmem:[#allocation8 + $0x140] sm:$0xff]
        %v445 = vld [vmem:[#allocation8 + $0x148] sm:$0xff]
        %v446 = vld [vmem:[#allocation8 + $0x150] sm:$0xff]
        %v447 = vld [vmem:[#allocation8 + $0x158] sm:$0xff]
        %v448 = vld [vmem:[#allocation8 + $0x160] sm:$0xff]
        %v449 = vld [vmem:[#allocation8 + $0x168] sm:$0xff]
        %v450 = vld [vmem:[#allocation8 + $0x170] sm:$0xff]
        %v451 = vld [vmem:[#allocation8 + $0x178] sm:$0xff]
        %v452 = vld [vmem:[#allocation8 + $0x180] sm:$0xff]
        %v453 = vld [vmem:[#allocation8 + $0x188] sm:$0xff]
        %v454 = vld [vmem:[#allocation8 + $0x190] sm:$0xff]
        %v455 = vld [vmem:[#allocation8 + $0x198] sm:$0xff]
        %v456 = vld [vmem:[#allocation8 + $0x1a0] sm:$0xff]
        %v457 = vld [vmem:[#allocation8 + $0x1a8] sm:$0xff]
        %v458 = vld [vmem:[#allocation8 + $0x1b0] sm:$0xff]
        %v459 = vld [vmem:[#allocation8 + $0x1b8] sm:$0xff]
        %v460 = vld [vmem:[#allocation8 + $0x1c0] sm:$0xff]
        %v461 = vld [vmem:[#allocation8 + $0x1c8] sm:$0xff]
        %v462 = vld [vmem:[#allocation8 + $0x1d0] sm:$0xff]
        %v463 = vld [vmem:[#allocation8 + $0x1d8] sm:$0xff]
        %v464 = vld [vmem:[#allocation8 + $0x1e0] sm:$0xff]
        %v465 = vld [vmem:[#allocation8 + $0x1e8] sm:$0xff]
        %v466 = vld [vmem:[#allocation8 + $0x1f0] sm:$0xff]
        %v467 = vld [vmem:[#allocation8 + $0x1f8] sm:$0xff]
        %v468 = vld [vmem:[#allocation8 + $0x200] sm:$0xff]
        %v469 = vld [vmem:[#allocation8 + $0x208] sm:$0xff]
        %v470 = vld [vmem:[#allocation8 + $0x210] sm:$0xff]
        %v471 = vld [vmem:[#allocation8 + $0x218] sm:$0xff]
        %v472 = vld [vmem:[#allocation8 + $0x220] sm:$0xff]
        %v473 = vld [vmem:[#allocation8 + $0x228] sm:$0xff]
        %v474 = vld [vmem:[#allocation8 + $0x230] sm:$0xff]
        %v475 = vld [vmem:[#allocation8 + $0x238] sm:$0xff]
        %v476 = vld [vmem:[#allocation8 + $0x240] sm:$0xff]
        %v477 = vld [vmem:[#allocation8 + $0x248] sm:$0xff]
        %v478 = vld [vmem:[#allocation8 + $0x250] sm:$0xff]
        %v479 = vld [vmem:[#allocation8 + $0x258] sm:$0xff]
        %v480 = vld [vmem:[#allocation8 + $0x260] sm:$0xff]
        %v481 = vld [vmem:[#allocation8 + $0x268] sm:$0xff]
        %v482 = vld [vmem:[#allocation8 + $0x270] sm:$0xff]
        %v483 = vld [vmem:[#allocation8 + $0x278] sm:$0xff]
        %v484 = vld [vmem:[#allocation8 + $0x280] sm:$0xff]
        %v485 = vld [vmem:[#allocation8 + $0x288] sm:$0xff]
        %v486 = vld [vmem:[#allocation8 + $0x290] sm:$0xff]
        %v487 = vld [vmem:[#allocation8 + $0x298] sm:$0xff]
        %v488 = vld [vmem:[#allocation8 + $0x2a0] sm:$0xff]
        %v489 = vld [vmem:[#allocation8 + $0x2a8] sm:$0xff]
        %v490 = vld [vmem:[#allocation8 + $0x2b0] sm:$0xff]
        %v491 = vld [vmem:[#allocation8 + $0x2b8] sm:$0xff]
        %v492 = vld [vmem:[#allocation8 + $0x2c0] sm:$0xff]
        %v493 = vld [vmem:[#allocation8 + $0x2c8] sm:$0xff]
        %v494 = vld [vmem:[#allocation8 + $0x2d0] sm:$0xff]
        %v495 = vld [vmem:[#allocation8 + $0x2d8] sm:$0xff]
        %v496 = vld [vmem:[#allocation8 + $0x2e0] sm:$0xff]
        %v497 = vld [vmem:[#allocation8 + $0x2e8] sm:$0xff]
        %v498 = vld [vmem:[#allocation8 + $0x2f0] sm:$0xff]
        %v499 = vld [vmem:[#allocation8 + $0x2f8] sm:$0xff]
        %v500 = vld [vmem:[%s4] sm:$0x7]
        %v502 = vlaneseq
        %v503 = vshrl.u32 %v502, 7
        %v504 = vsub.s32 0, %v503
        %v505 = vrot.slane %v500, %v504
        %v506 = vlaneseq
        %v507 = vshrl.u32 %v506, 7
        %v508 = vsub.s32 1, %v507
        %v509 = vrot.slane %v500, %v508
        %v510 = vlaneseq
        %v511 = vshrl.u32 %v510, 7
        %v512 = vsub.s32 2, %v511
        %v513 = vrot.slane %v500, %v512
        %517 = vmatprep.subr.mxu0 %v450
        %518 = vmatpush1.msra.mxu0 %v449
        %519 = vmatprep.subr.mxu0 %v447
        %520 = vmatpush1.msra.mxu0 %v446
        %521 = vmatprep.subr.mxu0 %v444
        %522 = vmatpush1.msra.mxu0 %v443
        %523 = vmatprep.subr.mxu0 %v441
        %524 = vmatpush1.msra.mxu0 %v440
        %525 = vmatprep.subr.mxu0 %v438
        %526 = vmatpush1.msra.mxu0 %v437
        %527 = vmatprep.subr.mxu0 %v435
        %528 = vmatpush1.msra.mxu0 %v434
        %529 = vmatprep.subr.mxu0 %v432
        %530 = vmatpush1.msra.mxu0 %v431
        %531 = vmatprep.subr.mxu0 %v429
        %532 = vmatpush1.msra.mxu0 %v428
        %533 = vmatprep.subr.mxu0 %v426
        %534 = vmatpush1.msra.mxu0 %v425
        %535 = vmatprep.subr.mxu0 %v423
        %536 = vmatpush1.msra.mxu0 %v422
        %537 = vmatprep.subr.mxu0 %v420
        %538 = vmatpush1.msra.mxu0 %v419
        %539 = vmatprep.subr.mxu0 %v417
        %540 = vmatpush1.msra.mxu0 %v416
        %541 = vmatprep.subr.mxu0 %v414
        %542 = vmatpush1.msra.mxu0 %v413
        %543 = vmatprep.subr.mxu0 %v411
        %544 = vmatpush1.msra.mxu0 %v410
        %545 = vmatprep.subr.mxu0 %v408
        %546 = vmatpush1.msra.mxu0 %v407
        %547 = vmatprep.subr.mxu0 %v405
        %548 = vmatpush1.msra.mxu0 %v404
        %549 = vmatprep.subr.mxu0 %v498
        %550 = vmatpush2.msra.mxu0 %v497
        %551 = vmatprep.subr.mxu0 %v495
        %552 = vmatpush2.msra.mxu0 %v494
        %553 = vmatprep.subr.mxu0 %v492
        %554 = vmatpush2.msra.mxu0 %v491
        %555 = vmatprep.subr.mxu0 %v489
        %556 = vmatpush2.msra.mxu0 %v488
        %557 = vmatprep.subr.mxu0 %v486
        %558 = vmatpush2.msra.mxu0 %v485
        %559 = vmatprep.subr.mxu0 %v483
        %560 = vmatpush2.msra.mxu0 %v482
        %561 = vmatprep.subr.mxu0 %v480
        %562 = vmatpush2.msra.mxu0 %v479
        %563 = vmatprep.subr.mxu0 %v477
        %564 = vmatpush2.msra.mxu0 %v476
        %565 = vmatprep.subr.mxu0 %v474
        %566 = vmatpush2.msra.mxu0 %v473
        %567 = vmatprep.subr.mxu0 %v471
        %568 = vmatpush2.msra.mxu0 %v470
        %569 = vmatprep.subr.mxu0 %v468
        %570 = vmatpush2.msra.mxu0 %v467
        %571 = vmatprep.subr.mxu0 %v465
        %572 = vmatpush2.msra.mxu0 %v464
        %573 = vmatprep.subr.mxu0 %v462
        %574 = vmatpush2.msra.mxu0 %v461
        %575 = vmatprep.subr.mxu0 %v459
        %576 = vmatpush2.msra.mxu0 %v458
        %577 = vmatprep.subr.mxu0 %v456
        %578 = vmatpush2.msra.mxu0 %v455
        %579 = vmatprep.subr.mxu0 %v453
        %580 = vmatpush2.msra.mxu0 %v452
        %581 = vmatprep.mubr.f32.mxu0 %v403
        %582 = vmatmul.mubr.f32.gmra.mxu0 %v402
        %v583 = vpop.f32.mrf.mxu0
        %v584 = vadd.f32 %v505, %v583
        %v585 = vpop.f32.mrf.mxu0
        %v586 = vadd.f32 %v509, %v585
        %587 = vdwg.mxu0
        %588 = vmatprep.subr.mxu0 0.0
        %589 = vmatpush1.msra.mxu0 %v451
        %590 = vmatprep.subr.mxu0 0.0
        %591 = vmatpush1.msra.mxu0 %v448
        %592 = vmatprep.subr.mxu0 0.0
        %593 = vmatpush1.msra.mxu0 %v445
        %594 = vmatprep.subr.mxu0 0.0
        %595 = vmatpush1.msra.mxu0 %v442
        %596 = vmatprep.subr.mxu0 0.0
        %597 = vmatpush1.msra.mxu0 %v439
        %598 = vmatprep.subr.mxu0 0.0
        %599 = vmatpush1.msra.mxu0 %v436
        %600 = vmatprep.subr.mxu0 0.0
        %601 = vmatpush1.msra.mxu0 %v433
        %602 = vmatprep.subr.mxu0 0.0
        %603 = vmatpush1.msra.mxu0 %v430
        %604 = vmatprep.subr.mxu0 0.0
        %605 = vmatpush1.msra.mxu0 %v427
        %606 = vmatprep.subr.mxu0 0.0
        %607 = vmatpush1.msra.mxu0 %v424
        %608 = vmatprep.subr.mxu0 0.0
        %609 = vmatpush1.msra.mxu0 %v421
        %610 = vmatprep.subr.mxu0 0.0
        %611 = vmatpush1.msra.mxu0 %v418
        %612 = vmatprep.subr.mxu0 0.0
        %613 = vmatpush1.msra.mxu0 %v415
        %614 = vmatprep.subr.mxu0 0.0
        %615 = vmatpush1.msra.mxu0 %v412
        %616 = vmatprep.subr.mxu0 0.0
        %617 = vmatpush1.msra.mxu0 %v409
        %618 = vmatprep.subr.mxu0 0.0
        %619 = vmatpush1.msra.mxu0 %v406
        %620 = vmatprep.subr.mxu0 0.0
        %621 = vmatpush2.msra.mxu0 %v499
        %622 = vmatprep.subr.mxu0 0.0
        %623 = vmatpush2.msra.mxu0 %v496
        %624 = vmatprep.subr.mxu0 0.0
        %625 = vmatpush2.msra.mxu0 %v493
        %626 = vmatprep.subr.mxu0 0.0
        %627 = vmatpush2.msra.mxu0 %v490
        %628 = vmatprep.subr.mxu0 0.0
        %629 = vmatpush2.msra.mxu0 %v487
        %630 = vmatprep.subr.mxu0 0.0
        %631 = vmatpush2.msra.mxu0 %v484
        %632 = vmatprep.subr.mxu0 0.0
        %633 = vmatpush2.msra.mxu0 %v481
        %634 = vmatprep.subr.mxu0 0.0
        %635 = vmatpush2.msra.mxu0 %v478
        %636 = vmatprep.subr.mxu0 0.0
        %637 = vmatpush2.msra.mxu0 %v475
        %638 = vmatprep.subr.mxu0 0.0
        %639 = vmatpush2.msra.mxu0 %v472
        %640 = vmatprep.subr.mxu0 0.0
        %641 = vmatpush2.msra.mxu0 %v469
        %642 = vmatprep.subr.mxu0 0.0
        %643 = vmatpush2.msra.mxu0 %v466
        %644 = vmatprep.subr.mxu0 0.0
        %645 = vmatpush2.msra.mxu0 %v463
        %646 = vmatprep.subr.mxu0 0.0
        %647 = vmatpush2.msra.mxu0 %v460
        %648 = vmatprep.subr.mxu0 0.0
        %649 = vmatpush2.msra.mxu0 %v457
        %650 = vmatprep.subr.mxu0 0.0
        %651 = vmatpush2.msra.mxu0 %v454
        %652 = vmatprep.mubr.f32.mxu0 %v403
        %653 = vmatmul.mubr.f32.gmra.mxu0 %v402
        %v654 = vpop.f32.mrf.mxu0
        %v655 = vadd.f32 %v513, %v654
        %v656 = vpop.f32.mrf.mxu0
        %657 = vdwg.mxu0
        %v658 = vld [vmem:[#allocation10] sm:$0xff]
        %v659 = vld [vmem:[#allocation10 + $0x8] sm:$0xff]
        %v660 = vld [vmem:[#allocation10 + $0x10] sm:$0xff]
        %v661 = vld [vmem:[#allocation10 + $0x18] sm:$0xff]
        %v662 = vld [vmem:[#allocation10 + $0x20] sm:$0xff]
        %v663 = vld [vmem:[#allocation10 + $0x28] sm:$0xff]
        %v664 = vld [vmem:[#allocation10 + $0x30] sm:$0xff]
        %v665 = vld [vmem:[#allocation10 + $0x38] sm:$0xff]
        %v666 = vld [vmem:[#allocation10 + $0x40] sm:$0xff]
        %v667 = vld [vmem:[#allocation10 + $0x48] sm:$0xff]
        %v668 = vld [vmem:[#allocation10 + $0x50] sm:$0xff]
        %v669 = vld [vmem:[#allocation10 + $0x58] sm:$0xff]
        %v670 = vld [vmem:[#allocation10 + $0x60] sm:$0xff]
        %v671 = vld [vmem:[#allocation10 + $0x68] sm:$0xff]
        %v672 = vld [vmem:[#allocation10 + $0x70] sm:$0xff]
        %v673 = vld [vmem:[#allocation10 + $0x78] sm:$0xff]
        %v674 = vld [vmem:[%s6] sm:$0x1]
        %675 = vmatprep.subr.mxu0 0.0
        %676 = vmatpush1.msra.mxu0 %v673
        %677 = vmatprep.subr.mxu0 0.0
        %678 = vmatpush1.msra.mxu0 %v672
        %679 = vmatprep.subr.mxu0 0.0
        %680 = vmatpush1.msra.mxu0 %v671
        %681 = vmatprep.subr.mxu0 0.0
        %682 = vmatpush1.msra.mxu0 %v670
        %683 = vmatprep.subr.mxu0 0.0
        %684 = vmatpush1.msra.mxu0 %v669
        %685 = vmatprep.subr.mxu0 0.0
        %686 = vmatpush1.msra.mxu0 %v668
        %687 = vmatprep.subr.mxu0 0.0
        %688 = vmatpush1.msra.mxu0 %v667
        %689 = vmatprep.subr.mxu0 0.0
        %690 = vmatpush1.msra.mxu0 %v666
        %691 = vmatprep.subr.mxu0 0.0
        %692 = vmatpush1.msra.mxu0 %v665
        %693 = vmatprep.subr.mxu0 0.0
        %694 = vmatpush1.msra.mxu0 %v664
        %695 = vmatprep.subr.mxu0 0.0
        %696 = vmatpush1.msra.mxu0 %v663
        %697 = vmatprep.subr.mxu0 0.0
        %698 = vmatpush1.msra.mxu0 %v662
        %699 = vmatprep.subr.mxu0 0.0
        %700 = vmatpush1.msra.mxu0 %v661
        %701 = vmatprep.subr.mxu0 0.0
        %702 = vmatpush1.msra.mxu0 %v660
        %703 = vmatprep.subr.mxu0 0.0
        %704 = vmatpush1.msra.mxu0 %v659
        %705 = vmatprep.subr.mxu0 0.0
        %706 = vmatpush1.msra.mxu0 %v658
        %707 = vmatprep.subr.mxu0 0.0
        %708 = vmatpush2.msra.mxu0 0.0
        %709 = vmatprep.subr.mxu0 0.0
        %710 = vmatpush2.msra.mxu0 0.0
        %711 = vmatprep.subr.mxu0 0.0
        %712 = vmatpush2.msra.mxu0 0.0
        %713 = vmatprep.subr.mxu0 0.0
        %714 = vmatpush2.msra.mxu0 0.0
        %715 = vmatprep.subr.mxu0 0.0
        %716 = vmatpush2.msra.mxu0 0.0
        %717 = vmatprep.subr.mxu0 0.0
        %718 = vmatpush2.msra.mxu0 0.0
        %719 = vmatprep.subr.mxu0 0.0
        %720 = vmatpush2.msra.mxu0 0.0
        %721 = vmatprep.subr.mxu0 0.0
        %722 = vmatpush2.msra.mxu0 0.0
        %723 = vmatprep.subr.mxu0 0.0
        %724 = vmatpush2.msra.mxu0 0.0
        %725 = vmatprep.subr.mxu0 0.0
        %726 = vmatpush2.msra.mxu0 0.0
        %727 = vmatprep.subr.mxu0 0.0
        %728 = vmatpush2.msra.mxu0 0.0
        %729 = vmatprep.subr.mxu0 0.0
        %730 = vmatpush2.msra.mxu0 0.0
        %731 = vmatprep.subr.mxu0 0.0
        %732 = vmatpush2.msra.mxu0 0.0
        %733 = vmatprep.subr.mxu0 0.0
        %734 = vmatpush2.msra.mxu0 0.0
        %735 = vmatprep.subr.mxu0 0.0
        %736 = vmatpush2.msra.mxu0 0.0
        %737 = vmatprep.subr.mxu0 0.0
        %738 = vmatpush2.msra.mxu0 0.0
        %739 = vmatprep.mubr.f32.mxu0 0.0
        %740 = vmatmul.mubr.f32.gmra.mxu0 %v403
        %v741 = vpop.f32.mrf.mxu0
        %v742 = vadd.f32 %v674, %v741
        %v743 = vpop.f32.mrf.mxu0
        %744 = vdwg.mxu0
        %v745 = vxor.u32 %v584, 2147483648
        %v746 = vmul.f32 %v745, 1.442695
        %v747 = vpow.pop %v746
        %v748 = vadd.f32 %v747, 1.0
        %v749 = vrcp.pop %v748
        %v750 = vmul.f32 1.0, %v749
        %v751 = vxor.u32 %v586, 2147483648
        %v752 = vmul.f32 %v751, 1.442695
        %v753 = vpow.pop %v752
        %v754 = vadd.f32 %v753, 1.0
        %v755 = vrcp.pop %v754
        %v756 = vmul.f32 1.0, %v755
        %v757 = vsub.f32 %v750, 1.0
        %v758 = vmul.f32 %v757, %v742
        %v759 = vadd.f32 %v655, %v758
        %v760 = vtanh.pop %v759
        %v761 = vsub.f32 1.0, %v756
        %v762 = vmul.f32 %v761, %v760
        %v763 = vmul.f32 %v756, %v403
        %v764 = vadd.f32 %v762, %v763
        %765 = vst [vmem:[#allocation2] sm:$0x1] %v764
        %v766 = vld [vmem:[#allocation11] sm:$0xff]
        %v767 = vld [vmem:[#allocation11 + $0x8] sm:$0xff]
        %v768 = vld [vmem:[#allocation11 + $0x10] sm:$0xff]
        %v769 = vld [vmem:[#allocation11 + $0x18] sm:$0xff]
        %v770 = vld [vmem:[#allocation11 + $0x20] sm:$0xff]
        %v771 = vld [vmem:[#allocation11 + $0x28] sm:$0xff]
        %v772 = vld [vmem:[#allocation11 + $0x30] sm:$0xff]
        %v773 = vld [vmem:[#allocation11 + $0x38] sm:$0xff]
        %v774 = vld [vmem:[#allocation11 + $0x40] sm:$0xff]
        %v775 = vld [vmem:[#allocation11 + $0x48] sm:$0xff]
        %v776 = vld [vmem:[#allocation11 + $0x50] sm:$0xff]
        %v777 = vld [vmem:[#allocation11 + $0x58] sm:$0xff]
        %v778 = vld [vmem:[#allocation11 + $0x60] sm:$0xff]
        %v779 = vld [vmem:[#allocation11 + $0x68] sm:$0xff]
        %v780 = vld [vmem:[#allocation11 + $0x70] sm:$0xff]
        %v781 = vld [vmem:[#allocation11 + $0x78] sm:$0xff]
        %v782 = vld [vmem:[%s8] sm:$0x1]
        %783 = vmatprep.subr.mxu0 0.0
        %784 = vmatpush1.msra.mxu0 %v781
        %785 = vmatprep.subr.mxu0 0.0
        %786 = vmatpush1.msra.mxu0 %v780
        %787 = vmatprep.subr.mxu0 0.0
        %788 = vmatpush1.msra.mxu0 %v779
        %789 = vmatprep.subr.mxu0 0.0
        %790 = vmatpush1.msra.mxu0 %v778
        %791 = vmatprep.subr.mxu0 0.0
        %792 = vmatpush1.msra.mxu0 %v777
        %793 = vmatprep.subr.mxu0 0.0
        %794 = vmatpush1.msra.mxu0 %v776
        %795 = vmatprep.subr.mxu0 0.0
        %796 = vmatpush1.msra.mxu0 %v775
        %797 = vmatprep.subr.mxu0 0.0
        %798 = vmatpush1.msra.mxu0 %v774
        %799 = vmatprep.subr.mxu0 0.0
        %800 = vmatpush1.msra.mxu0 %v773
        %801 = vmatprep.subr.mxu0 0.0
        %802 = vmatpush1.msra.mxu0 %v772
        %803 = vmatprep.subr.mxu0 0.0
        %804 = vmatpush1.msra.mxu0 %v771
        %805 = vmatprep.subr.mxu0 0.0
        %806 = vmatpush1.msra.mxu0 %v770
        %807 = vmatprep.subr.mxu0 0.0
        %808 = vmatpush1.msra.mxu0 %v769
        %809 = vmatprep.subr.mxu0 0.0
        %810 = vmatpush1.msra.mxu0 %v768
        %811 = vmatprep.subr.mxu0 0.0
        %812 = vmatpush1.msra.mxu0 %v767
        %813 = vmatprep.subr.mxu0 0.0
        %814 = vmatpush1.msra.mxu0 %v766
        %815 = vmatprep.subr.mxu0 0.0
        %816 = vmatpush2.msra.mxu0 0.0
        %817 = vmatprep.subr.mxu0 0.0
        %818 = vmatpush2.msra.mxu0 0.0
        %819 = vmatprep.subr.mxu0 0.0
        %820 = vmatpush2.msra.mxu0 0.0
        %821 = vmatprep.subr.mxu0 0.0
        %822 = vmatpush2.msra.mxu0 0.0
        %823 = vmatprep.subr.mxu0 0.0
        %824 = vmatpush2.msra.mxu0 0.0
        %825 = vmatprep.subr.mxu0 0.0
        %826 = vmatpush2.msra.mxu0 0.0
        %827 = vmatprep.subr.mxu0 0.0
        %828 = vmatpush2.msra.mxu0 0.0
        %829 = vmatprep.subr.mxu0 0.0
        %830 = vmatpush2.msra.mxu0 0.0
        %831 = vmatprep.subr.mxu0 0.0
        %832 = vmatpush2.msra.mxu0 0.0
        %833 = vmatprep.subr.mxu0 0.0
        %834 = vmatpush2.msra.mxu0 0.0
        %835 = vmatprep.subr.mxu0 0.0
        %836 = vmatpush2.msra.mxu0 0.0
        %837 = vmatprep.subr.mxu0 0.0
        %838 = vmatpush2.msra.mxu0 0.0
        %839 = vmatprep.subr.mxu0 0.0
        %840 = vmatpush2.msra.mxu0 0.0
        %841 = vmatprep.subr.mxu0 0.0
        %842 = vmatpush2.msra.mxu0 0.0
        %843 = vmatprep.subr.mxu0 0.0
        %844 = vmatpush2.msra.mxu0 0.0
        %845 = vmatprep.subr.mxu0 0.0
        %846 = vmatpush2.msra.mxu0 0.0
        %847 = vmatprep.mubr.f32.mxu0 0.0
        %848 = vmatmul.mubr.f32.gmra.mxu0 %v764
        %v849 = vpop.f32.mrf.mxu0
        %v850 = vadd.f32 %v782, %v849
        %v851 = vpop.f32.mrf.mxu0
        %852 = vdwg.mxu0
        %853 = vst [vmem:[%s392] sm:$0x1] %v850
        %p854 = scmp.eq.s32.totalorder %s35, 7
        // Predicated region
        $region73: #{tpu_custom_call.1} parent=51 // pred_check
          %p855 = pneg %p854
        $region74: #{tpu_custom_call.1} parent=51 // pred_check_branch
          %857 = sbr.rel (%p855) target = $region76
        $region75: #{tpu_custom_call.1} parent=51 // pred_region
          %858 = vst [vmem:[#allocation14] sm:$0x1] %v764
        $region76: #{tpu_custom_call.1} parent=51 // pred_fallthru
          _
        %s859 = sand.u32 %s218, 1
        %s860 = scalar_lea.sflag [#allocation7], %s859
        %s861 = sand.u32 %s218, 1
        %s862 = scalar_lea.vmem [#allocation13], %s861
        // Predicated region
        $region77: #{tpu_custom_call.1} parent=51 // pred_check
          %p863 = pneg %p228
        $region78: #{tpu_custom_call.1} parent=51 // pred_check_branch
          %865 = sbr.rel (%p863) target = $region80
        $region79: #{tpu_custom_call.1} parent=51 // pred_region
          %s867 = ssub.s32 16, 16
          %868 = vsyncadd %s860, %s867
          %s869 = smul.addr %s35, 16
          %s870 = scalar_lea.hbm %s9, %s869
          %s872 = sshll.u32 %s862, 4
          %s873 = int_to_ptr.vmem [resolvable:$true] %s872
          %875 = dma.vmem_to_hbm [thread:$0]  %s873, 16, %s870, %s860
        $region80: #{tpu_custom_call.1} parent=51 // pred_fallthru
          _
        // Predicated region
        $region81: #{tpu_custom_call.1} parent=51 // pred_check
          %p876 = pneg %p249
        $region82: #{tpu_custom_call.1} parent=51 // pred_check_branch
          %878 = sbr.rel (%p876) target = $region84
        $region83: #{tpu_custom_call.1} parent=51 // pred_region
          %s880 = ssub.s32 16, 16
          %881 = vsyncadd [#allocation15], %s880
          %s883 = sshll.u32 [#allocation14], 4
          %s884 = int_to_ptr.vmem [resolvable:$true] %s883
          %886 = dma.vmem_to_hbm [thread:$0]  %s884, 16, %s10, [#allocation15]
        $region84: #{tpu_custom_call.1} parent=51 // pred_fallthru
          _
        // Predicated region
        $region85: #{tpu_custom_call.1} parent=51 // pred_check
          %p887 = pneg %p249
        $region86: #{tpu_custom_call.1} parent=51 // pred_check_branch
          %889 = sbr.rel (%p887) target = $region88
        $region87: #{tpu_custom_call.1} parent=51 // pred_region
          %890 = dma.done [#allocation15], 16
        $region88: #{tpu_custom_call.1} parent=51 // pred_fallthru
          _
      $region52: #{tpu_custom_call.1} parent=5 // pred_fallthru
        _
      %p891 = scmp.le.s32.totalorder 2, %s30
      // Predicated region
      $region89: #{tpu_custom_call.1} parent=5 // pred_check
        %p892 = pneg %p891
      $region90: #{tpu_custom_call.1} parent=5 // pred_check_branch
        %894 = sbr.rel (%p892) target = $region92
      $region91: #{tpu_custom_call.1} parent=5 // pred_region
        %s895 = ssub.s32 %s30, 2
        // Predicated region
        $region93: #{tpu_custom_call.1} parent=91 // pred_check
          %p896 = pneg %p234
        $region94: #{tpu_custom_call.1} parent=91 // pred_check_branch
          %898 = sbr.rel (%p896) target = $region96
        $region95: #{tpu_custom_call.1} parent=91 // pred_region
          %s899 = sand.u32 %s219, 1
          %s900 = scalar_lea.sflag [#allocation7], %s899
          %s901 = sand.u32 %s219, 1
          %s902 = scalar_lea.vmem [#allocation13], %s901
          %903 = dma.done %s900, 16
        $region96: #{tpu_custom_call.1} parent=91 // pred_fallthru
          _
      $region92: #{tpu_custom_call.1} parent=5 // pred_fallthru
        _
    $region6: #{tpu_custom_call.1} parent=1 // loop_footer
      %s34 = sadd.s32 1, %s30
    $region7: #{tpu_custom_call.1} parent=1 // loop_footer_branch
      %29 = sbr.rel target = $region3
    $region8: #{tpu_custom_call.1} parent=1 // loop_exit
      _
    %904 = vsyncpa [#allocation6], 1
    %s905 = scalar_lea.sflag [#allocation6], 1
    %906 = vsyncpa %s905, 1
    %907 = vsyncpa [#allocation9], 1
    %908 = vsyncpa [#allocation12], 1
    %909 = vsyncpa [#allocation7], 1
    %s910 = scalar_lea.sflag [#allocation7], 1
    %911 = vsyncpa %s910, 1
    %912 = vsyncpa [#allocation15], 1

</llo_original>
